<compile_context>
chip_gen: v5e
topology: v5e:2x2
jax: 0.10.0
libtpu: 0.0.40
codegen_flags: <defaults>
</compile_context>

<pallas_src>
import jax
import jax.numpy as jnp
from jax.experimental import pallas as pl
from jax.experimental.pallas import tpu as pltpu


_TARGET_TILE_BYTES = 4 * 1024 * 1024  # per input buffer; 4x (in+out, 2-deep) fits 32 MiB
_SUBLANES = 8


def _mish_kernel(x_ref, o_ref):
    xf = x_ref[...].astype(jnp.float32)
    # One exp instead of exp+log1p+tanh:
    #   tanh(softplus(x)) = (u^2 - 1) / (u^2 + 1),  u = 1 + e^x
    # Branch-free overflow-safe form with t = exp(-|x|) in (0, 1]:
    #   x >= 0:  num = 1 + 2t           den = 1 + 2t + 2t^2
    #   x <  0:  num = 2t + t^2         den = 2 + 2t + t^2
    t = jnp.exp(-jnp.abs(xf))
    t2 = t * t
    pos = xf >= 0.0
    num = jnp.where(pos, 1.0 + 2.0 * t, 2.0 * t + t2)
    den = jnp.where(pos, 1.0 + 2.0 * t + 2.0 * t2, 2.0 + 2.0 * t + t2)
    # Approximate reciprocal (EUP slot) + two Newton steps (VPU, ~free) so the
    # result meets ~1e-5 f32 accuracy.
    r = pl.reciprocal(den, approx=True)
    r = r * (2.0 - den * r)
    r = r * (2.0 - den * r)
    y = xf * num * r
    o_ref[...] = y.astype(o_ref.dtype)


def _choose_width(n):
    """Pick a wide, lane-dense last dim; prefer one that divides n (no pad)."""
    for w in (4096, 2048, 1024, 512, 256, 128):
        if n % w == 0:
            return w
    return 512  # pad path (pad < 512 elements)


def mish(x):
    """Mish activation via a Pallas TPU kernel. Any shape / float dtype."""
    orig_shape = x.shape
    orig_dtype = x.dtype
    n = x.size

    W = _choose_width(n)
    flat = x.reshape(-1)
    n_pad = (-n) % W
    if n_pad:
        # Only hit when no lane-dense width divides n; pad is < W elements.
        flat = jnp.pad(flat, (0, n_pad))
    rows = flat.size // W
    x2d = flat.reshape(rows, W)

    # Tile sizing: ~4 MiB per buffer, multiple of 8 sublanes, and at least
    # 2 grid steps for larger inputs so v7x megacore shards across both TCs.
    itemsize = jnp.dtype(orig_dtype).itemsize
    target_rows = max(_SUBLANES, _TARGET_TILE_BYTES // (W * itemsize))
    target_rows -= target_rows % _SUBLANES
    if rows <= _SUBLANES:
        tile_rows = rows  # full-dim block (allowed even if not a multiple of 8)
    else:
        half = -(-rows // 2)
        half = ((half + _SUBLANES - 1) // _SUBLANES) * _SUBLANES
        tile_rows = min(target_rows, half)
        tile_rows = max(_SUBLANES, tile_rows - tile_rows % _SUBLANES)

    grid = (pl.cdiv(rows, tile_rows),)

    out2d = pl.pallas_call(
        _mish_kernel,
        out_shape=jax.ShapeDtypeStruct((rows, W), orig_dtype),
        grid_spec=pltpu.PrefetchScalarGridSpec(
            num_scalar_prefetch=0,
            grid=grid,
            in_specs=[pl.BlockSpec((tile_rows, W), lambda i: (i, 0))],
            out_specs=pl.BlockSpec((tile_rows, W), lambda i: (i, 0)),
        ),
        compiler_params=pltpu.CompilerParams(
            dimension_semantics=("parallel",),
            vmem_limit_bytes=32 * 1024 * 1024,
        ),
    )(x2d)

    if n_pad:
        return out2d.reshape(-1)[:n].reshape(orig_shape)
    return out2d.reshape(orig_shape)


def mish_ref(x):
    xf = x.astype(jnp.float32)
    return (xf * jnp.tanh(jax.nn.softplus(xf))).astype(x.dtype)


if __name__ == "__main__":
    key = jax.random.PRNGKey(0)
    # NCHW input, small shapes: batch=2, channels=4, spatial=16x16
    x = jax.random.normal(key, (2, 4, 16, 16), dtype=jnp.float32) * 3.0

    y = mish(x)
    jax.block_until_ready(y)
    y_ref = mish_ref(x)
    assert y.shape == x.shape and y.dtype == x.dtype
    assert jnp.allclose(y, y_ref, atol=1e-5, rtol=1e-5), "mismatch vs reference"

    # Also exercise the padded (non-128-multiple) path once.
    x_odd = jax.random.normal(jax.random.PRNGKey(1), (3, 5, 7), dtype=jnp.float32) * 3.0
    y_odd = mish(x_odd)
    jax.block_until_ready(y_odd)
    assert jnp.allclose(y_odd, mish_ref(x_odd), atol=1e-5, rtol=1e-5), "mismatch (odd shape)"

    print("KERNEL_OK")
</pallas_src>

<mosaic_0001>
module attributes {stable_mosaic.version = 11 : i64} {
  func.func @_mish_kernel(%arg0: i32, %arg1: memref<1x2048xf32, #tpu.memory_space<vmem>>, %arg2: memref<1x2048xf32, #tpu.memory_space<vmem>>) attributes {dimension_semantics = [#tpu.dimension_semantics<parallel>], iteration_bounds = array<i64: 1>, scalar_prefetch = 0 : i64, scratch_operands = 0 : i64, tpu.core_type = #tpu.core_type<tc>, window_params = [{transform_indices = @transform_0, window_bounds = array<i64: 1, 2048>}, {transform_indices = @transform_1, window_bounds = array<i64: 1, 2048>}]} {
    %c0 = arith.constant 0 : index
    %c0_0 = arith.constant 0 : index
    %0 = vector.load %arg1[%c0, %c0_0] : memref<1x2048xf32, #tpu.memory_space<vmem>>, vector<1x2048xf32>
    %1 = math.absf %0 : vector<1x2048xf32>
    %cst = arith.constant 0.000000e+00 : f32
    %2 = vector.broadcast %cst : f32 to vector<1x2048xf32>
    %3 = arith.subf %2, %1 : vector<1x2048xf32>
    %4 = math.exp %3 : vector<1x2048xf32>
    %5 = arith.mulf %4, %4 : vector<1x2048xf32>
    %cst_1 = arith.constant 0.000000e+00 : f32
    %6 = vector.broadcast %cst_1 : f32 to vector<1x2048xf32>
    %7 = arith.cmpf oge, %0, %6 : vector<1x2048xf32>
    %cst_2 = arith.constant 2.000000e+00 : f32
    %8 = vector.broadcast %cst_2 : f32 to vector<1x2048xf32>
    %9 = arith.mulf %8, %4 : vector<1x2048xf32>
    %cst_3 = arith.constant 1.000000e+00 : f32
    %10 = vector.broadcast %cst_3 : f32 to vector<1x2048xf32>
    %11 = arith.addf %10, %9 : vector<1x2048xf32>
    %cst_4 = arith.constant 2.000000e+00 : f32
    %12 = vector.broadcast %cst_4 : f32 to vector<1x2048xf32>
    %13 = arith.mulf %12, %4 : vector<1x2048xf32>
    %14 = arith.addf %13, %5 : vector<1x2048xf32>
    %15 = arith.select %7, %11, %14 : vector<1x2048xi1>, vector<1x2048xf32>
    %cst_5 = arith.constant 2.000000e+00 : f32
    %16 = vector.broadcast %cst_5 : f32 to vector<1x2048xf32>
    %17 = arith.mulf %16, %4 : vector<1x2048xf32>
    %cst_6 = arith.constant 1.000000e+00 : f32
    %18 = vector.broadcast %cst_6 : f32 to vector<1x2048xf32>
    %19 = arith.addf %18, %17 : vector<1x2048xf32>
    %cst_7 = arith.constant 2.000000e+00 : f32
    %20 = vector.broadcast %cst_7 : f32 to vector<1x2048xf32>
    %21 = arith.mulf %20, %5 : vector<1x2048xf32>
    %22 = arith.addf %19, %21 : vector<1x2048xf32>
    %cst_8 = arith.constant 2.000000e+00 : f32
    %23 = vector.broadcast %cst_8 : f32 to vector<1x2048xf32>
    %24 = arith.mulf %23, %4 : vector<1x2048xf32>
    %cst_9 = arith.constant 2.000000e+00 : f32
    %25 = vector.broadcast %cst_9 : f32 to vector<1x2048xf32>
    %26 = arith.addf %25, %24 : vector<1x2048xf32>
    %27 = arith.addf %26, %5 : vector<1x2048xf32>
    %28 = arith.select %7, %22, %27 : vector<1x2048xi1>, vector<1x2048xf32>
    %29 = tpu.reciprocal %28 {approx = true} : vector<1x2048xf32> -> vector<1x2048xf32>
    %30 = arith.mulf %28, %29 : vector<1x2048xf32>
    %cst_10 = arith.constant 2.000000e+00 : f32
    %31 = vector.broadcast %cst_10 : f32 to vector<1x2048xf32>
    %32 = arith.subf %31, %30 : vector<1x2048xf32>
    %33 = arith.mulf %29, %32 : vector<1x2048xf32>
    %34 = arith.mulf %28, %33 : vector<1x2048xf32>
    %cst_11 = arith.constant 2.000000e+00 : f32
    %35 = vector.broadcast %cst_11 : f32 to vector<1x2048xf32>
    %36 = arith.subf %35, %34 : vector<1x2048xf32>
    %37 = arith.mulf %33, %36 : vector<1x2048xf32>
    %38 = arith.mulf %0, %15 : vector<1x2048xf32>
    %39 = arith.mulf %38, %37 : vector<1x2048xf32>
    %c0_12 = arith.constant 0 : index
    %c0_13 = arith.constant 0 : index
    %40 = vector.load %arg2[%c0_12, %c0_13] : memref<1x2048xf32, #tpu.memory_space<vmem>>, vector<1x2048xf32>
    tpu.vector_store %arg2[%c0_12, %c0_13], %39 {strides = array<i32>} : memref<1x2048xf32, #tpu.memory_space<vmem>>, vector<1x2048xf32>,
    return
  }
  func.func @transform_0(%arg0: i32) -> (i32, i32) {
    %c0_i32 = arith.constant 0 : i32
    %c0_i32_0 = arith.constant 0 : i32
    return %arg0, %c0_i32 : i32, i32
  }
  func.func @transform_1(%arg0: i32) -> (i32, i32) {
    %c0_i32 = arith.constant 0 : i32
    %c0_i32_0 = arith.constant 0 : i32
    return %arg0, %c0_i32 : i32, i32
  }
}

</mosaic_0001>

<llo_original>
// kernel: tpu_custom_call.1
$region0: #{tpu_custom_call.1}
  #allocation0 [shape = 'u32[]', space=smem, size = 0x4, offset = 0x4, fixed_abs, tag = 'smem constant byte address 0x4 - core index']
  #allocation1 [shape = 'u32[72,128]{1,0:T(1,128)}', space=vmem, size = 0x9000, scoped, tag = 'internal scratch']
  %s0 = inlined_call_operand.hbm [shape: f32[1,2048], index: 0, kind: input, shape index: {}]
  %s1 = inlined_call_operand.hbm [shape: f32[1,2048], index: 1, kind: output, shape index: {}]
  %s2 = sld [smem:[#allocation0]]
  $region18: #{tpu_custom_call.1} parent=0
    _
  %s4 = ssub.s32 1, %s2
  %s5 = scalar_select 0, %s4, %s2
  $region1: #{tpu_custom_call.1} parent=0
    #allocation2 [shape = 'u8[8192]{0}', space=vmem, size = 0x2000, scoped, tag = 'input window, operand 0, single buffered']
    #allocation3 [shape = 's32[1]{0}', space=sflag, size = 0x4, scoped, tag = 'scoped memory for tpu_custom_call.1']
    #allocation4 [shape = 's32[1]{0}', space=sflag, size = 0x4, scoped, tag = 'scoped memory for tpu_custom_call.1']
    #allocation5 [shape = 'u8[8192]{0}', space=vmem, size = 0x2000, scoped, tag = 'output window, operand 0, single buffered']
    %6 = vsyncpa [#allocation3], 0
    %7 = vsyncpa [#allocation4], 0
    // Predicated region
    $region2: #{tpu_custom_call.1} parent=1 // pred_check
      _
    $region3: #{tpu_custom_call.1} parent=1 // pred_check_branch
      %9 = sbr.rel (0) target = $region5
    $region4: #{tpu_custom_call.1} parent=1 // pred_region
      %11 = vsyncadd [#allocation3], 0
      %s13 = sshll.u32 %s0, 4
      %s14 = int_to_ptr.hbm [resolvable:$true] %s13
      %s15 = sshll.u32 [#allocation2], 4
      %s16 = int_to_ptr.vmem [resolvable:$true] %s15
      %18 = dma.hbm_to_vmem [thread:$0]  %s14, 256, %s16, [#allocation3]
    $region5: #{tpu_custom_call.1} parent=1 // pred_fallthru
      _
    // Predicated region
    $region6: #{tpu_custom_call.1} parent=1 // pred_check
      _
    $region7: #{tpu_custom_call.1} parent=1 // pred_check_branch
      %20 = sbr.rel (0) target = $region9
    $region8: #{tpu_custom_call.1} parent=1 // pred_region
      %22 = dma.done [#allocation3], 256
    $region9: #{tpu_custom_call.1} parent=1 // pred_fallthru
      _
    %v23 = vld [vmem:[#allocation2] sm:$0xff]
    %v24 = vld [vmem:[#allocation2 + $0x8] sm:$0xff]
    %v25 = vand.u32 2147483647, %v23
    %v26 = vand.u32 2147483647, %v24
    %v27 = vsub.f32 0.0, %v25
    %v28 = vsub.f32 0.0, %v26
    %v29 = vmul.f32 %v27, 1.442695
    %v30 = vpow.pop %v29
    %v31 = vmul.f32 %v28, 1.442695
    %v32 = vpow.pop %v31
    %v33 = vmul.f32 %v30, %v30
    %v34 = vmul.f32 %v32, %v32
    %vm35 = vcmp.ge.f32.partialorder %v23, 0.0
    %vm36 = vcmp.ge.f32.partialorder %v24, 0.0
    %v37 = vmul.f32 %v30, 2.0
    %v38 = vmul.f32 %v32, 2.0
    %v39 = vadd.f32 %v37, 1.0
    %v40 = vadd.f32 %v38, 1.0
    %v41 = vadd.f32 %v37, %v33
    %v42 = vadd.f32 %v38, %v34
    %v43 = vsel %vm35, %v39, %v41
    %v44 = vsel %vm36, %v40, %v42
    %v45 = vmul.f32 %v33, 2.0
    %v46 = vmul.f32 %v34, 2.0
    %v47 = vadd.f32 %v39, %v45
    %v48 = vadd.f32 %v40, %v46
    %v49 = vadd.f32 %v37, 2.0
    %v50 = vadd.f32 %v38, 2.0
    %v51 = vadd.f32 %v49, %v33
    %v52 = vadd.f32 %v50, %v34
    %v53 = vsel %vm35, %v47, %v51
    %v54 = vsel %vm36, %v48, %v52
    %v55 = vrcp.pop %v53
    %v56 = vrcp.pop %v54
    %v57 = vmul.f32 %v53, %v55
    %v58 = vmul.f32 %v54, %v56
    %v59 = vsub.f32 2.0, %v57
    %v60 = vsub.f32 2.0, %v58
    %v61 = vmul.f32 %v55, %v59
    %v62 = vmul.f32 %v56, %v60
    %v63 = vmul.f32 %v53, %v61
    %v64 = vmul.f32 %v54, %v62
    %v65 = vsub.f32 2.0, %v63
    %v66 = vsub.f32 2.0, %v64
    %v67 = vmul.f32 %v61, %v65
    %v68 = vmul.f32 %v62, %v66
    %v69 = vmul.f32 %v23, %v43
    %v70 = vmul.f32 %v24, %v44
    %v71 = vmul.f32 %v69, %v67
    %v72 = vmul.f32 %v70, %v68
    %73 = vst [vmem:[#allocation5] sm:$0xff] %v71
    %74 = vst [vmem:[#allocation5 + $0x8] sm:$0xff] %v72
    // Predicated region
    $region10: #{tpu_custom_call.1} parent=1 // pred_check
      _
    $region11: #{tpu_custom_call.1} parent=1 // pred_check_branch
      %76 = sbr.rel (0) target = $region13
    $region12: #{tpu_custom_call.1} parent=1 // pred_region
      %78 = vsyncadd [#allocation4], 0
      %s80 = sshll.u32 [#allocation5], 4
      %s81 = int_to_ptr.vmem [resolvable:$true] %s80
      %s82 = sshll.u32 %s1, 4
      %s83 = int_to_ptr.hbm [resolvable:$true] %s82
      %85 = dma.vmem_to_hbm [thread:$0]  %s81, 256, %s83, [#allocation4]
    $region13: #{tpu_custom_call.1} parent=1 // pred_fallthru
      _
    // Predicated region
    $region14: #{tpu_custom_call.1} parent=1 // pred_check
      _
    $region15: #{tpu_custom_call.1} parent=1 // pred_check_branch
      %87 = sbr.rel (0) target = $region17
    $region16: #{tpu_custom_call.1} parent=1 // pred_region
      %89 = dma.done [#allocation4], 256
    $region17: #{tpu_custom_call.1} parent=1 // pred_fallthru
      _
    %90 = vsyncpa [#allocation3], 1
    %91 = vsyncpa [#allocation4], 1

</llo_original>
